<compile_context>
chip_gen: v7x
topology: tpu7x:2x2x1
jax: 0.10.0
libtpu: 0.0.40
codegen_flags: <defaults>
</compile_context>

<pallas_src>
import jax
import jax.numpy as jnp
from jax.experimental import pallas as pl
from jax.experimental.pallas import tpu as pltpu


def _round_up(v, m):
    return ((v + m - 1) // m) * m


# ---------------------------------------------------------------------------
# Fused kernel factory.
#   out[i_tile, :] = (sum over nonzero k-blocks Ahat[i,k] @ M[k]) [@ W] + b
# Grid: (row tiles, nonzero-block steps).  tbl / cnt are scalar-prefetched.
# ---------------------------------------------------------------------------
def _make_gcn_kernel(tile, n_steps, m_resident, with_transform):
    def kernel(tbl_ref, cnt_ref, a_ref, m_ref, *rest):
        if with_transform:
            w_ref, b_ref, o_ref, acc_ref = rest
        else:
            b_ref, o_ref, acc_ref = rest

        i = pl.program_id(0)
        s = pl.program_id(1)

        @pl.when(s == 0)
        def _init():
            acc_ref[...] = jnp.zeros_like(acc_ref)

        # Skip compute on padded steps; their DMA is already skipped because the
        # block table repeats the previous (already resident) block index.
        @pl.when(s < cnt_ref[i])
        def _compute():
            if m_resident:
                kblk = tbl_ref[i * n_steps + s]
                off = pl.multiple_of(kblk * tile, tile)
                m_blk = m_ref[pl.ds(off, tile), :]
            else:
                m_blk = m_ref[...]
            acc_ref[...] += jnp.dot(a_ref[...], m_blk,
                                    preferred_element_type=jnp.float32)

        @pl.when(s == pl.num_programs(1) - 1)
        def _finalize():
            r = acc_ref[...]
            if with_transform:
                # Tiny once-per-row-tile matmul; keep it f32 (no bf16 round-trip).
                r = jnp.dot(r, w_ref[...], preferred_element_type=jnp.float32)
            o_ref[...] = (r + b_ref[...]).astype(o_ref.dtype)

    return kernel


# ---------------------------------------------------------------------------
# Glue: normalized adjacency + block-nonzero table (plain JAX, scatter ops)
# ---------------------------------------------------------------------------
def build_norm_adj_padded(edge_index, n, npad):
    """PyG-normalized adjacency, scattered directly into the padded buffer and
    emitted bf16 in one fused scale+cast pass (single O(N^2) HBM write)."""
    src, dst = edge_index[0], edge_index[1]
    adj = jnp.zeros((npad, npad), jnp.float32)
    adj = adj.at[dst, src].add(1.0)                    # duplicate edges count (PyG)
    diag = jnp.arange(n)
    dvals = adj[diag, diag]
    adj = adj.at[diag, diag].set(jnp.where(dvals > 0, dvals, 1.0))  # remaining self loops
    deg = adj.sum(axis=1)
    dinv = jnp.where(deg > 0, 1.0 / jnp.sqrt(deg), 0.0)
    return (adj * dinv[:, None] * dinv[None, :]).astype(jnp.bfloat16)


def build_block_table(edge_index, n, npad, tile):
    """Per row-tile list of nonzero adjacency k-blocks (ascending), padded by
    repeating the last valid index so skipped steps reuse the resident block."""
    nb = npad // tile
    src, dst = edge_index[0], edge_index[1]
    blk = jnp.zeros((nb, nb), bool)
    blk = blk.at[dst // tile, src // tile].set(True)             # edge blocks
    dreal = jnp.arange(-(-n // tile))
    blk = blk.at[dreal, dreal].set(True)                         # self-loop diag blocks
    cnt = blk.sum(axis=1).astype(jnp.int32)
    order = jnp.argsort(jnp.logical_not(blk).astype(jnp.int32), axis=1)  # nonzeros first
    pos = jnp.minimum(jnp.arange(nb)[None, :], jnp.maximum(cnt - 1, 0)[:, None])
    tbl = jnp.take_along_axis(order, pos, axis=1).astype(jnp.int32)
    try:
        # eager path: shrink the step axis to the densest row tile
        n_steps = max(int(jnp.max(cnt)), 1)
    except Exception:
        # under jit the count is a tracer -> fall back to the dense step count
        n_steps = nb
    return tbl[:, :n_steps].reshape(-1), cnt, n_steps


def _pick_tile(npad, max_tile=512):
    tile = 128
    for cand in (512, 256, 128):
        if cand <= max_tile and npad % cand == 0:
            tile = cand
            break
    # v7x has two TensorCores: give the "parallel" row axis >= 2 tiles if possible.
    while npad // tile < 2 and tile > 128:
        tile //= 2
    return tile


# ---------------------------------------------------------------------------
# Forward wrapper
# ---------------------------------------------------------------------------
def gcn_body_forward(x, edge_index, weight, bias, *, max_tile=512):
    n, f = x.shape
    h = weight.shape[1]
    fp, hp = _round_up(f, 128), _round_up(h, 128)
    npad = _round_up(n, 128)            # pad N to 128, NOT to the tile size
    tile = _pick_tile(npad, max_tile)
    nb = npad // tile

    adj_p = build_norm_adj_padded(edge_index, n, npad)          # (npad, npad) bf16
    tbl, cnt, n_steps = build_block_table(edge_index, n, npad, tile)

    b_p = jnp.pad(jnp.asarray(bias, jnp.float32).reshape(1, -1),
                  ((0, 0), (0, hp - h)))

    with_transform = fp < hp            # contraction order chosen by min(fp, hp)
    if with_transform:
        # aggregate X first (width fp), apply W in the f32 epilogue
        m = jnp.pad(x, ((0, npad - n), (0, fp - f))).astype(jnp.bfloat16)
        w_p = jnp.pad(weight, ((0, fp - f), (0, hp - h))).astype(jnp.float32)
        d = fp
    else:
        # tiny prologue transform: aggregate XW (width hp)
        xw = jnp.dot(x, weight, preferred_element_type=jnp.float32)
        m = jnp.pad(xw, ((0, npad - n), (0, hp - h))).astype(jnp.bfloat16)
        w_p = None
        d = hp

    # Keep M fully VMEM-resident (no per-row-tile re-reads) when it is small.
    m_resident = npad * d * 2 <= (8 << 20)

    kernel = _make_gcn_kernel(tile, n_steps, m_resident, with_transform)

    if m_resident:
        m_spec = pl.BlockSpec((npad, d), lambda i, s, tbl, cnt: (0, 0))
    else:
        m_spec = pl.BlockSpec((tile, d),
                              lambda i, s, tbl, cnt: (tbl[i * n_steps + s], 0))

    in_specs = [
        pl.BlockSpec((tile, tile),
                     lambda i, s, tbl, cnt: (i, tbl[i * n_steps + s])),  # Ahat block
        m_spec,                                                          # M
    ]
    operands = [adj_p, m]
    if with_transform:
        in_specs.append(pl.BlockSpec((fp, hp), lambda i, s, tbl, cnt: (0, 0)))  # W
        operands.append(w_p)
    in_specs.append(pl.BlockSpec((1, hp), lambda i, s, tbl, cnt: (0, 0)))        # bias
    operands.append(b_p)

    # Explicit VMEM budget (double buffers included), capped for v7x's 64 MiB.
    a_bytes = 2 * tile * tile * 2
    m_bytes = 2 * (npad if m_resident else tile) * d * 2
    w_bytes = 2 * fp * hp * 4 if with_transform else 0
    o_bytes = 2 * tile * hp * 4
    acc_bytes = tile * d * 4
    need = a_bytes + m_bytes + w_bytes + o_bytes + acc_bytes + 2 * hp * 4
    vmem_limit = int(min(max(need * 2, 32 << 20), 48 << 20))

    out_p = pl.pallas_call(
        kernel,
        out_shape=jax.ShapeDtypeStruct((npad, hp), jnp.float32),
        grid_spec=pltpu.PrefetchScalarGridSpec(
            num_scalar_prefetch=2,
            grid=(nb, n_steps),
            in_specs=in_specs,
            out_specs=pl.BlockSpec((tile, hp), lambda i, s, tbl, cnt: (i, 0)),
            scratch_shapes=[pltpu.VMEM((tile, d), jnp.float32)],
        ),
        compiler_params=pltpu.CompilerParams(
            dimension_semantics=("parallel", "arbitrary"),
            vmem_limit_bytes=vmem_limit),
    )(tbl, cnt, *operands)

    return out_p[:n, :h]


# ---------------------------------------------------------------------------
# References for the self-test
# ---------------------------------------------------------------------------
def _dense_norm_adj(edge_index, n):
    src, dst = edge_index[0], edge_index[1]
    adj = jnp.zeros((n, n), jnp.float32).at[dst, src].add(1.0)
    diag = jnp.arange(n)
    dvals = adj[diag, diag]
    adj = adj.at[diag, diag].set(jnp.where(dvals > 0, dvals, 1.0))
    deg = adj.sum(axis=1)
    dinv = jnp.where(deg > 0, 1.0 / jnp.sqrt(deg), 0.0)
    return adj * dinv[:, None] * dinv[None, :]


def reference_f32(x, edge_index, weight, bias):
    hi = jax.lax.Precision.HIGHEST
    adj = _dense_norm_adj(edge_index, x.shape[0])
    return (jnp.dot(adj, jnp.dot(x, weight, precision=hi), precision=hi)
            + jnp.asarray(bias).reshape(1, -1))


def reference_matched(x, edge_index, weight, bias):
    """Pure-JAX reference with the same cast points / contraction order as the kernel."""
    n, f = x.shape
    h = weight.shape[1]
    fp, hp = _round_up(f, 128), _round_up(h, 128)
    hi = jax.lax.Precision.HIGHEST
    adj = _dense_norm_adj(edge_index, n).astype(jnp.bfloat16).astype(jnp.float32)
    b = jnp.asarray(bias, jnp.float32).reshape(1, -1)
    if fp < hp:
        xb = x.astype(jnp.bfloat16).astype(jnp.float32)
        agg = jnp.dot(adj, xb, precision=hi)
        return jnp.dot(agg, weight.astype(jnp.float32), precision=hi) + b
    xw = jnp.dot(x, weight, preferred_element_type=jnp.float32)
    xwb = xw.astype(jnp.bfloat16).astype(jnp.float32)
    return jnp.dot(adj, xwb, precision=hi) + b


def glorot(key, shape):
    fan_in, fan_out = shape
    limit = jnp.sqrt(6.0 / (fan_in + fan_out))
    return jax.random.uniform(key, shape, jnp.float32, -limit, limit)


def _ring_edges(n):
    idx = jnp.arange(n, dtype=jnp.int32)
    nxt = (idx + 1) % n
    return jnp.stack([jnp.concatenate([idx, nxt]),
                      jnp.concatenate([nxt, idx])]).astype(jnp.int32)


# TODO(synk): for very large graphs the dense (npad,npad) bf16 adjacency in HBM and
# the O(N^2) wrapper scatter remain the footprint bound; a fully edge-list-driven
# gather SpMM would remove them, but has no clean dense-BlockSpec equivalent here.

# ---------------------------------------------------------------------------
if __name__ == "__main__":
    key = jax.random.PRNGKey(0)

    def run_case(name, x, edge_index, weight, bias):
        out = jax.block_until_ready(gcn_body_forward(x, edge_index, weight, bias))
        assert out.shape == (x.shape[0], weight.shape[1]), (name, out.shape)
        ref_m = reference_matched(x, edge_index, weight, bias)
        assert jnp.allclose(out, ref_m, atol=5e-3, rtol=5e-3), \
            (name, float(jnp.max(jnp.abs(out - ref_m))))
        ref_f = reference_f32(x, edge_index, weight, bias)
        assert jnp.allclose(out, ref_f, atol=6e-2, rtol=6e-2), \
            (name, float(jnp.max(jnp.abs(out - ref_f))))

    # Case 1: original small demo (hp <= fp path after padding, single block).
    k_x, k_w, k_b, key = jax.random.split(key, 4)
    N1, F1, H1 = 8, 16, 32
    x1 = jax.random.normal(k_x, (N1, F1), jnp.float32)
    e1 = jnp.array([[0, 1, 1, 2, 3, 4, 5, 6, 7, 2],
                    [1, 0, 2, 1, 4, 3, 6, 5, 2, 7]], dtype=jnp.int32)
    w1 = glorot(k_w, (F1, H1))
    b1 = 0.1 * jax.random.normal(k_b, (H1,), jnp.float32)
    run_case("small", x1, e1, w1, b1)

    # Case 2: fp < hp path (f32 epilogue transform), multi-block sparse ring graph.
    k_x, k_w, k_b, key = jax.random.split(key, 4)
    N2, F2, H2 = 300, 16, 200
    x2 = jax.random.normal(k_x, (N2, F2), jnp.float32)
    run_case("wide_hidden", x2, _ring_edges(N2), glorot(k_w, (F2, H2)),
             0.1 * jax.random.normal(k_b, (H2,), jnp.float32))

    # Case 3: hp <= fp path with fp > hp (XW prologue), two row tiles (v7x sharding).
    k_x, k_w, k_b, key = jax.random.split(key, 4)
    N3, F3, H3 = 200, 300, 16
    x3 = jax.random.normal(k_x, (N3, F3), jnp.float32)
    run_case("wide_feat", x3, _ring_edges(N3), glorot(k_w, (F3, H3)),
             0.1 * jax.random.normal(k_b, (H3,), jnp.float32))

    print("KERNEL_OK")
</pallas_src>

<mosaic_0001>
module attributes {stable_mosaic.version = 11 : i64} {
  func.func @kernel(%arg0: i32, %arg1: i32, %arg2: memref<1xi32, #tpu.memory_space<smem>>, %arg3: memref<1xi32, #tpu.memory_space<smem>>, %arg4: memref<128x128xbf16, #tpu.memory_space<vmem>>, %arg5: memref<128x128xbf16, #tpu.memory_space<vmem>>, %arg6: memref<1x128xf32, #tpu.memory_space<vmem>>, %arg7: memref<128x128xf32, #tpu.memory_space<vmem>>, %arg8: memref<128x128xf32, #tpu.memory_space<vmem>>) attributes {dimension_semantics = [#tpu.dimension_semantics<parallel>, #tpu.dimension_semantics<arbitrary>], iteration_bounds = array<i64: 1, 1>, scalar_prefetch = 2 : i64, scratch_operands = 1 : i64, tpu.core_type = #tpu.core_type<tc>, window_params = [{transform_indices = @transform_0, window_bounds = array<i64: 128, 128>}, {pipeline_mode = #tpu.pipeline_mode<synchronous>, transform_indices = @transform_1, window_bounds = array<i64: 128, 128>}, {pipeline_mode = #tpu.pipeline_mode<synchronous>, transform_indices = @transform_2, window_bounds = array<i64: 1, 128>}, {transform_indices = @transform_3, window_bounds = array<i64: 128, 128>}]} {
    %c0_i32 = arith.constant 0 : i32
    %0 = arith.cmpi eq, %arg1, %c0_i32 : i32
    %1 = arith.extui %0 : i1 to i32
    %c0_i32_0 = arith.constant 0 : i32
    %2 = arith.cmpi ne, %1, %c0_i32_0 : i32
    scf.if %2 {
      %cst = arith.constant 0.000000e+00 : f32
      %11 = vector.broadcast %cst : f32 to vector<128x128xf32>
      %c0 = arith.constant 0 : index
      %c0_4 = arith.constant 0 : index
      %12 = vector.load %arg8[%c0, %c0_4] : memref<128x128xf32, #tpu.memory_space<vmem>>, vector<128x128xf32>
      tpu.vector_store %arg8[%c0, %c0_4], %11 {strides = array<i32>} : memref<128x128xf32, #tpu.memory_space<vmem>>, vector<128x128xf32>,
    } else {
    }
    %3 = arith.index_cast %arg0 : i32 to index
    %4 = memref.load %arg3[%3] : memref<1xi32, #tpu.memory_space<smem>>
    %5 = arith.cmpi slt, %arg1, %4 : i32
    %6 = arith.extui %5 : i1 to i32
    %c0_i32_1 = arith.constant 0 : i32
    %7 = arith.cmpi ne, %6, %c0_i32_1 : i32
    scf.if %7 {
      %c1_i32 = arith.constant 1 : i32
      %11 = arith.muli %arg0, %c1_i32 : i32
      %12 = arith.addi %11, %arg1 : i32
      %13 = arith.index_cast %12 : i32 to index
      %14 = memref.load %arg2[%13] : memref<1xi32, #tpu.memory_space<smem>>
      %c128_i32 = arith.constant 128 : i32
      %15 = arith.muli %14, %c128_i32 : i32
      %16 = tpu.assume_multiple %15, 128 : i32
      %17 = arith.index_cast %16 : i32 to index
      %c0 = arith.constant 0 : index
      %18 = vector.load %arg5[%17, %c0] : memref<128x128xbf16, #tpu.memory_space<vmem>>, vector<128x128xbf16>
      %c0_4 = arith.constant 0 : index
      %c0_5 = arith.constant 0 : index
      %19 = vector.load %arg8[%c0_4, %c0_5] : memref<128x128xf32, #tpu.memory_space<vmem>>, vector<128x128xf32>
      %c0_6 = arith.constant 0 : index
      %c0_7 = arith.constant 0 : index
      %20 = vector.load %arg4[%c0_6, %c0_7] : memref<128x128xbf16, #tpu.memory_space<vmem>>, vector<128x128xbf16>
      %cst = arith.constant dense<0.000000e+00> : vector<128x128xf32>
      %21 = tpu.matmul %20, %18, %cst {dimension_numbers = #tpu.dot_dimension_numbers<[1], [0], [0], [1], [0, 0, 1, 1], [], []>} : vector<128x128xbf16>, vector<128x128xbf16>, vector<128x128xf32> -> vector<128x128xf32>
      %22 = arith.addf %19, %21 : vector<128x128xf32>
      %c0_8 = arith.constant 0 : index
      %c0_9 = arith.constant 0 : index
      %23 = vector.load %arg8[%c0_8, %c0_9] : memref<128x128xf32, #tpu.memory_space<vmem>>, vector<128x128xf32>
      tpu.vector_store %arg8[%c0_8, %c0_9], %22 {strides = array<i32>} : memref<128x128xf32, #tpu.memory_space<vmem>>, vector<128x128xf32>,
    } else {
    }
    %c0_i32_2 = arith.constant 0 : i32
    %8 = arith.cmpi eq, %arg1, %c0_i32_2 : i32
    %9 = arith.extui %8 : i1 to i32
    %c0_i32_3 = arith.constant 0 : i32
    %10 = arith.cmpi ne, %9, %c0_i32_3 : i32
    scf.if %10 {
      %c0 = arith.constant 0 : index
      %c0_4 = arith.constant 0 : index
      %11 = vector.load %arg8[%c0, %c0_4] : memref<128x128xf32, #tpu.memory_space<vmem>>, vector<128x128xf32>
      %c0_5 = arith.constant 0 : index
      %c0_6 = arith.constant 0 : index
      %12 = vector.load %arg6[%c0_5, %c0_6] : memref<1x128xf32, #tpu.memory_space<vmem>>, vector<1x128xf32>
      %13 = vector.broadcast %12 : vector<1x128xf32> to vector<128x128xf32>
      %14 = arith.addf %11, %13 : vector<128x128xf32>
      %c0_7 = arith.constant 0 : index
      %c0_8 = arith.constant 0 : index
      %15 = vector.load %arg7[%c0_7, %c0_8] : memref<128x128xf32, #tpu.memory_space<vmem>>, vector<128x128xf32>
      tpu.vector_store %arg7[%c0_7, %c0_8], %14 {strides = array<i32>} : memref<128x128xf32, #tpu.memory_space<vmem>>, vector<128x128xf32>,
    } else {
    }
    return
  }
  func.func @transform_0(%arg0: i32, %arg1: i32, %arg2: memref<1xi32, #tpu.memory_space<smem>>, %arg3: memref<1xi32, #tpu.memory_space<smem>>) -> (i32, i32) {
    %c1_i32 = arith.constant 1 : i32
    %0 = arith.muli %arg0, %c1_i32 : i32
    %1 = arith.addi %0, %arg1 : i32
    %2 = arith.index_cast %1 : i32 to index
    %3 = memref.load %arg2[%2] : memref<1xi32, #tpu.memory_space<smem>>
    %c0_i32 = arith.constant 0 : i32
    return %arg0, %3 : i32, i32
  }
  func.func @transform_1(%arg0: i32, %arg1: i32, %arg2: memref<1xi32, #tpu.memory_space<smem>>, %arg3: memref<1xi32, #tpu.memory_space<smem>>) -> (i32, i32) {
    %c0_i32 = arith.constant 0 : i32
    %c0_i32_0 = arith.constant 0 : i32
    %c0_i32_1 = arith.constant 0 : i32
    return %c0_i32, %c0_i32_0 : i32, i32
  }
  func.func @transform_2(%arg0: i32, %arg1: i32, %arg2: memref<1xi32, #tpu.memory_space<smem>>, %arg3: memref<1xi32, #tpu.memory_space<smem>>) -> (i32, i32) {
    %c0_i32 = arith.constant 0 : i32
    %c0_i32_0 = arith.constant 0 : i32
    %c0_i32_1 = arith.constant 0 : i32
    return %c0_i32, %c0_i32_0 : i32, i32
  }
  func.func @transform_3(%arg0: i32, %arg1: i32, %arg2: memref<1xi32, #tpu.memory_space<smem>>, %arg3: memref<1xi32, #tpu.memory_space<smem>>) -> (i32, i32) {
    %c0_i32 = arith.constant 0 : i32
    %c0_i32_0 = arith.constant 0 : i32
    return %arg0, %c0_i32 : i32, i32
  }
}

</mosaic_0001>

<llo_original>
// kernel: tpu_custom_call.1
$region0: #{tpu_custom_call.1}
  #allocation0 [shape = 'u32[]', space=smem, size = 0x4, offset = 0x4, fixed_abs, tag = 'smem constant byte address 0x4 - core index']
  #allocation1 [shape = 'u32[144,128]{1,0:T(1,128)}', space=vmem, size = 0x12000, scoped, tag = 'internal scratch']
  #allocation2 [shape = 'f32[128,128]{1,0:T(8,128)}', space=vmem, size = 0x10000, scoped, tag = 'scratch operand']
  #allocation3 [shape = 's32[1]{0}', space=sflag, size = 0x4, scoped, tag = 'scoped memory for tpu_custom_call.1']
  #allocation4 [shape = 's32[1]{0:T(128)S(6)}', space=smem, size = 0x200, scoped, tag = 'prefetched SMEM operand 0']
  #allocation5 [shape = 's32[1]{0:T(128)S(6)}', space=smem, size = 0x200, scoped, tag = 'prefetched SMEM operand 1']
  %s0 = inlined_call_operand.<no memory space> [shape: s32[1], index: 0, kind: input, shape index: {}]
  %s1 = inlined_call_operand.<no memory space> [shape: s32[1], index: 1, kind: input, shape index: {}]
  %s2 = inlined_call_operand.hbm [shape: bf16[128,128], index: 2, kind: input, shape index: {}]
  %s3 = inlined_call_operand.hbm [shape: bf16[128,128], index: 3, kind: input, shape index: {}]
  %s4 = inlined_call_operand.vmem [shape: f32[1,128], index: 4, kind: input, shape index: {}]
  %s5 = inlined_call_operand.hbm [shape: f32[128,128], index: 5, kind: output, shape index: {}]
  %s6 = sld [smem:[#allocation0]]
  $region42: #{tpu_custom_call.1} parent=0
    _
  %s8 = ssub.s32 1, %s6
  %s9 = scalar_select 0, %s8, %s6
  %10 = sst [smem:[#allocation4]] %s0
  %11 = sst [smem:[#allocation5]] %s1
  $region1: #{tpu_custom_call.1} parent=0
    #allocation6 [shape = 'u8[32768]{0}', space=vmem, size = 0x8000, scoped, tag = 'input window, operand 2, single buffered']
    #allocation7 [shape = 's32[1]{0}', space=sflag, size = 0x4, scoped, tag = 'scoped memory for tpu_custom_call.1']
    #allocation8 [shape = 's32[1]{0}', space=sflag, size = 0x4, scoped, tag = 'scoped memory for tpu_custom_call.1']
    #allocation9 [shape = 'u8[32768]{0}', space=vmem, size = 0x8000, scoped, tag = 'input window, operand 3, single buffered']
    #allocation10 [shape = 's32[1]{0}', space=sflag, size = 0x4, scoped, tag = 'scoped memory for tpu_custom_call.1']
    #allocation11 [shape = 'u8[65536]{0}', space=vmem, size = 0x10000, scoped, tag = 'output window, operand 0, single buffered']
    %12 = vsyncpa [#allocation7], 0
    %13 = vsyncpa [#allocation10], 0
    %14 = vsyncpa [#allocation8], 0
    // Predicated region
    $region2: #{tpu_custom_call.1} parent=1 // pred_check
      _
    $region3: #{tpu_custom_call.1} parent=1 // pred_check_branch
      %16 = sbr.rel (0) target = $region5
    $region4: #{tpu_custom_call.1} parent=1 // pred_region
      %s17 = sadd.s32 0, 0
      %s18 = sld [smem:[#allocation4 + %s17]]
      %s20 = ssub.s32 1024, 1024
      %21 = vsyncadd [#allocation7], %s20
      %s22 = smul.addr %s18, 64
      %s23 = scalar_lea.hbm %s2, %s22
      %s24 = sshll.u32 [#allocation6], 4
      %s25 = int_to_ptr.vmem [resolvable:$true] %s24
      %30 = dma.hbm_to_vmem [thread:$0]  %s23, 1024, %s25, [#allocation7], 64, 64, 4
    $region5: #{tpu_custom_call.1} parent=1 // pred_fallthru
      _
    // Predicated region
    $region6: #{tpu_custom_call.1} parent=1 // pred_check
      _
    $region7: #{tpu_custom_call.1} parent=1 // pred_check_branch
      %32 = sbr.rel (0) target = $region9
    $region8: #{tpu_custom_call.1} parent=1 // pred_region
      %s34 = ssub.s32 1024, 1024
      %35 = vsyncadd [#allocation10], %s34
      %s36 = sshll.u32 [#allocation9], 4
      %s37 = int_to_ptr.vmem [resolvable:$true] %s36
      %42 = dma.hbm_to_vmem [thread:$0]  %s3, 1024, %s37, [#allocation10], 64, 64, 4
    $region9: #{tpu_custom_call.1} parent=1 // pred_fallthru
      _
    // Predicated region
    $region10: #{tpu_custom_call.1} parent=1 // pred_check
      _
    $region11: #{tpu_custom_call.1} parent=1 // pred_check_branch
      %44 = sbr.rel (0) target = $region13
    $region12: #{tpu_custom_call.1} parent=1 // pred_region
      _
    $region13: #{tpu_custom_call.1} parent=1 // pred_fallthru
      _
    // Predicated region
    $region14: #{tpu_custom_call.1} parent=1 // pred_check
      _
    $region15: #{tpu_custom_call.1} parent=1 // pred_check_branch
      %46 = sbr.rel (0) target = $region17
    $region16: #{tpu_custom_call.1} parent=1 // pred_region
      %47 = dma.done [#allocation7], 1024
    $region17: #{tpu_custom_call.1} parent=1 // pred_fallthru
      _
    // Predicated region
    $region18: #{tpu_custom_call.1} parent=1 // pred_check
      _
    $region19: #{tpu_custom_call.1} parent=1 // pred_check_branch
      %49 = sbr.rel (0) target = $region21
    $region20: #{tpu_custom_call.1} parent=1 // pred_region
      %50 = dma.done [#allocation10], 1024
    $region21: #{tpu_custom_call.1} parent=1 // pred_fallthru
      _
    %s51 = sadd.s32 0, 0
    %s52 = sld [smem:[#allocation4 + %s51]]
    %p54 = scmp.eq.s32.totalorder 0, 0
    // Predicated region
    $region22: #{tpu_custom_call.1} parent=1 // pred_check
      %p55 = pneg %p54
    $region23: #{tpu_custom_call.1} parent=1 // pred_check_branch
      %57 = sbr.rel (%p55) target = $region25
    $region24: #{tpu_custom_call.1} parent=1 // pred_region
      %58 = vst [vmem:[#allocation2] sm:$0xff] 0.0
      %59 = vst [vmem:[#allocation2 + $0x8] sm:$0xff] 0.0
      %60 = vst [vmem:[#allocation2 + $0x10] sm:$0xff] 0.0
      %61 = vst [vmem:[#allocation2 + $0x18] sm:$0xff] 0.0
      %62 = vst [vmem:[#allocation2 + $0x20] sm:$0xff] 0.0
      %63 = vst [vmem:[#allocation2 + $0x28] sm:$0xff] 0.0
      %64 = vst [vmem:[#allocation2 + $0x30] sm:$0xff] 0.0
      %65 = vst [vmem:[#allocation2 + $0x38] sm:$0xff] 0.0
      %66 = vst [vmem:[#allocation2 + $0x40] sm:$0xff] 0.0
      %67 = vst [vmem:[#allocation2 + $0x48] sm:$0xff] 0.0
      %68 = vst [vmem:[#allocation2 + $0x50] sm:$0xff] 0.0
      %69 = vst [vmem:[#allocation2 + $0x58] sm:$0xff] 0.0
      %70 = vst [vmem:[#allocation2 + $0x60] sm:$0xff] 0.0
      %71 = vst [vmem:[#allocation2 + $0x68] sm:$0xff] 0.0
      %72 = vst [vmem:[#allocation2 + $0x70] sm:$0xff] 0.0
      %73 = vst [vmem:[#allocation2 + $0x78] sm:$0xff] 0.0
    $region25: #{tpu_custom_call.1} parent=1 // pred_fallthru
      _
    %s74 = sld [smem:[#allocation5]]
    %p75 = scmp.lt.s32.totalorder 0, %s74
    // Predicated region
    $region26: #{tpu_custom_call.1} parent=1 // pred_check
      %p76 = pneg %p75
    $region27: #{tpu_custom_call.1} parent=1 // pred_check_branch
      %78 = sbr.rel (%p76) target = $region29
    $region28: #{tpu_custom_call.1} parent=1 // pred_region
      %s79 = sadd.s32 0, 0
      %s80 = sld [smem:[#allocation4 + %s79]]
      %s81 = smul.u32 %s80, 128
      %s82 = sshra.s32 %s81, 3
      %s83 = sand.u32 %s81, 7
      %s84 = smul.addr %s82, 4
      %s85 = scalar_lea.vmem [#allocation9], %s84
      %v86 = vld [vmem:[%s85] sm:$0xf]
      %v87 = vld [vmem:[%s85 + $0x4] sm:$0xf]
      %v88 = vld [vmem:[%s85 + $0x8] sm:$0xf]
      %v89 = vld [vmem:[%s85 + $0xc] sm:$0xf]
      %v90 = vld [vmem:[%s85 + $0x10] sm:$0xf]
      %v91 = vld [vmem:[%s85 + $0x14] sm:$0xf]
      %v92 = vld [vmem:[%s85 + $0x18] sm:$0xf]
      %v93 = vld [vmem:[%s85 + $0x1c] sm:$0xf]
      %v94 = vld [vmem:[%s85 + $0x20] sm:$0xf]
      %v95 = vld [vmem:[%s85 + $0x24] sm:$0xf]
      %v96 = vld [vmem:[%s85 + $0x28] sm:$0xf]
      %v97 = vld [vmem:[%s85 + $0x2c] sm:$0xf]
      %v98 = vld [vmem:[%s85 + $0x30] sm:$0xf]
      %v99 = vld [vmem:[%s85 + $0x34] sm:$0xf]
      %v100 = vld [vmem:[%s85 + $0x38] sm:$0xf]
      %v101 = vld [vmem:[%s85 + $0x3c] sm:$0xf]
      %v102 = vld [vmem:[#allocation2] sm:$0xff]
      %v103 = vld [vmem:[#allocation2 + $0x8] sm:$0xff]
      %v104 = vld [vmem:[#allocation2 + $0x10] sm:$0xff]
      %v105 = vld [vmem:[#allocation2 + $0x18] sm:$0xff]
      %v106 = vld [vmem:[#allocation2 + $0x20] sm:$0xff]
      %v107 = vld [vmem:[#allocation2 + $0x28] sm:$0xff]
      %v108 = vld [vmem:[#allocation2 + $0x30] sm:$0xff]
      %v109 = vld [vmem:[#allocation2 + $0x38] sm:$0xff]
      %v110 = vld [vmem:[#allocation2 + $0x40] sm:$0xff]
      %v111 = vld [vmem:[#allocation2 + $0x48] sm:$0xff]
      %v112 = vld [vmem:[#allocation2 + $0x50] sm:$0xff]
      %v113 = vld [vmem:[#allocation2 + $0x58] sm:$0xff]
      %v114 = vld [vmem:[#allocation2 + $0x60] sm:$0xff]
      %v115 = vld [vmem:[#allocation2 + $0x68] sm:$0xff]
      %v116 = vld [vmem:[#allocation2 + $0x70] sm:$0xff]
      %v117 = vld [vmem:[#allocation2 + $0x78] sm:$0xff]
      %v118 = vld [vmem:[#allocation6] sm:$0xf]
      %v119 = vld [vmem:[#allocation6 + $0x4] sm:$0xf]
      %v120 = vld [vmem:[#allocation6 + $0x8] sm:$0xf]
      %v121 = vld [vmem:[#allocation6 + $0xc] sm:$0xf]
      %v122 = vld [vmem:[#allocation6 + $0x10] sm:$0xf]
      %v123 = vld [vmem:[#allocation6 + $0x14] sm:$0xf]
      %v124 = vld [vmem:[#allocation6 + $0x18] sm:$0xf]
      %v125 = vld [vmem:[#allocation6 + $0x1c] sm:$0xf]
      %v126 = vld [vmem:[#allocation6 + $0x20] sm:$0xf]
      %v127 = vld [vmem:[#allocation6 + $0x24] sm:$0xf]
      %v128 = vld [vmem:[#allocation6 + $0x28] sm:$0xf]
      %v129 = vld [vmem:[#allocation6 + $0x2c] sm:$0xf]
      %v130 = vld [vmem:[#allocation6 + $0x30] sm:$0xf]
      %v131 = vld [vmem:[#allocation6 + $0x34] sm:$0xf]
      %v132 = vld [vmem:[#allocation6 + $0x38] sm:$0xf]
      %v133 = vld [vmem:[#allocation6 + $0x3c] sm:$0xf]
      %v150 = vunpack.c.l.b16 %v118
      %v151 = vunpack.c.l.b16 %v119
      %v152 = vunpack.c.l.b16 %v120
      %v153 = vunpack.c.l.b16 %v121
      %v154 = vunpack.c.l.b16 %v122
      %v155 = vunpack.c.l.b16 %v123
      %v156 = vunpack.c.l.b16 %v124
      %v157 = vunpack.c.l.b16 %v125
      %v158 = vunpack.c.l.b16 %v126
      %v159 = vunpack.c.l.b16 %v127
      %v160 = vunpack.c.l.b16 %v128
      %v161 = vunpack.c.l.b16 %v129
      %v162 = vunpack.c.l.b16 %v130
      %v163 = vunpack.c.l.b16 %v131
      %v164 = vunpack.c.l.b16 %v132
      %v165 = vunpack.c.l.b16 %v133
      %v166 = vpack.c.b16 %v151, %v150
      %v167 = vpack.c.b16 %v153, %v152
      %v168 = vpack.c.b16 %v155, %v154
      %v169 = vpack.c.b16 %v157, %v156
      %v170 = vpack.c.b16 %v159, %v158
      %v171 = vpack.c.b16 %v161, %v160
      %v172 = vpack.c.b16 %v163, %v162
      %v173 = vpack.c.b16 %v165, %v164
      %v198 = vunpack.c.l.b16 %v86
      %v199 = vunpack.c.l.b16 %v87
      %v200 = vunpack.c.l.b16 %v88
      %v201 = vunpack.c.l.b16 %v89
      %v202 = vunpack.c.l.b16 %v90
      %v203 = vunpack.c.l.b16 %v91
      %v204 = vunpack.c.l.b16 %v92
      %v205 = vunpack.c.l.b16 %v93
      %v206 = vunpack.c.l.b16 %v94
      %v207 = vunpack.c.l.b16 %v95
      %v208 = vunpack.c.l.b16 %v96
      %v209 = vunpack.c.l.b16 %v97
      %v210 = vunpack.c.l.b16 %v98
      %v211 = vunpack.c.l.b16 %v99
      %v212 = vunpack.c.l.b16 %v100
      %v213 = vunpack.c.l.b16 %v101
      %v214 = vpack.c.b16 %v199, %v198
      %v215 = vpack.c.b16 %v201, %v200
      %v216 = vpack.c.b16 %v203, %v202
      %v217 = vpack.c.b16 %v205, %v204
      %v218 = vpack.c.b16 %v207, %v206
      %v219 = vpack.c.b16 %v209, %v208
      %v220 = vpack.c.b16 %v211, %v210
      %v221 = vpack.c.b16 %v213, %v212
      %230 = vmatprep.subr.bf16.mxu0 0
      %231 = vmatpush1.bf16.msra.mxu0 %v214
      %232 = vmatprep.subr.bf16.mxu0 0
      %233 = vmatpush1.bf16.msra.mxu0 %v215
      %234 = vmatprep.subr.bf16.mxu0 0
      %235 = vmatpush1.bf16.msra.mxu0 %v216
      %236 = vmatprep.subr.bf16.mxu0 0
      %237 = vmatpush1.bf16.msra.mxu0 %v217
      %238 = vmatprep.subr.bf16.mxu0 0
      %239 = vmatpush1.bf16.msra.mxu0 %v218
      %240 = vmatprep.subr.bf16.mxu0 0
      %241 = vmatpush1.bf16.msra.mxu0 %v219
      %242 = vmatprep.subr.bf16.mxu0 0
      %243 = vmatpush1.bf16.msra.mxu0 %v220
      %244 = vmatprep.subr.bf16.mxu0 0
      %245 = vmatpush1.bf16.msra.mxu0 %v221
      %246 = vmatprep.subr.bf16.mxu0 0
      %247 = vmatpush1.bf16.msra.mxu0 0
      %248 = vmatprep.subr.bf16.mxu0 0
      %249 = vmatpush1.bf16.msra.mxu0 0
      %250 = vmatprep.subr.bf16.mxu0 0
      %251 = vmatpush1.bf16.msra.mxu0 0
      %252 = vmatprep.subr.bf16.mxu0 0
      %253 = vmatpush1.bf16.msra.mxu0 0
      %254 = vmatprep.subr.bf16.mxu0 0
      %255 = vmatpush1.bf16.msra.mxu0 0
      %256 = vmatprep.subr.bf16.mxu0 0
      %257 = vmatpush1.bf16.msra.mxu0 0
      %258 = vmatprep.subr.bf16.mxu0 0
      %259 = vmatpush1.bf16.msra.mxu0 0
      %260 = vmatprep.subr.bf16.mxu0 0
      %261 = vmatpush1.bf16.msra.mxu0 0
      %262 = vmatprep.mubr.bf16.mxu0 0
      %263 = vmatmul.mubr.bf16.gmra.mrb[0].mxu0 %v166
      %v264 = vpop.f32.mrb[0].mxu0
      %v265 = vadd.f32 0.0, %v264
      %v266 = vpop.f32.mrb[0].mxu0
      %v267 = vpop.f32.mrb[0].mxu0
      %v268 = vadd.f32 0.0, %v267
      %v269 = vpop.f32.mrb[0].mxu0
      %270 = vmatprep.mubr.bf16.mxu0 0
      %271 = vmatmul.mubr.bf16.gmra.mrb[0].mxu0 %v167
      %v272 = vpop.f32.mrb[0].mxu0
      %v273 = vadd.f32 0.0, %v272
      %v274 = vpop.f32.mrb[0].mxu0
      %v275 = vpop.f32.mrb[0].mxu0
      %v276 = vadd.f32 0.0, %v275
      %v277 = vpop.f32.mrb[0].mxu0
      %278 = vmatprep.mubr.bf16.mxu0 0
      %279 = vmatmul.mubr.bf16.gmra.mrb[0].mxu0 %v168
      %v280 = vpop.f32.mrb[0].mxu0
      %v281 = vadd.f32 0.0, %v280
      %v282 = vpop.f32.mrb[0].mxu0
      %v283 = vpop.f32.mrb[0].mxu0
      %v284 = vadd.f32 0.0, %v283
      %v285 = vpop.f32.mrb[0].mxu0
      %286 = vmatprep.mubr.bf16.mxu0 0
      %287 = vmatmul.mubr.bf16.gmra.mrb[0].mxu0 %v169
      %v288 = vpop.f32.mrb[0].mxu0
      %v289 = vadd.f32 0.0, %v288
      %v290 = vpop.f32.mrb[0].mxu0
      %v291 = vpop.f32.mrb[0].mxu0
      %v292 = vadd.f32 0.0, %v291
      %v293 = vpop.f32.mrb[0].mxu0
      %294 = vmatprep.mubr.bf16.mxu0 0
      %295 = vmatmul.mubr.bf16.gmra.mrb[0].mxu0 %v170
      %v296 = vpop.f32.mrb[0].mxu0
      %v297 = vadd.f32 0.0, %v296
      %v298 = vpop.f32.mrb[0].mxu0
      %v299 = vpop.f32.mrb[0].mxu0
      %v300 = vadd.f32 0.0, %v299
      %v301 = vpop.f32.mrb[0].mxu0
      %302 = vmatprep.mubr.bf16.mxu0 0
      %303 = vmatmul.mubr.bf16.gmra.mrb[0].mxu0 %v171
      %v304 = vpop.f32.mrb[0].mxu0
      %v305 = vadd.f32 0.0, %v304
      %v306 = vpop.f32.mrb[0].mxu0
      %v307 = vpop.f32.mrb[0].mxu0
      %v308 = vadd.f32 0.0, %v307
      %v309 = vpop.f32.mrb[0].mxu0
      %310 = vmatprep.mubr.bf16.mxu0 0
      %311 = vmatmul.mubr.bf16.gmra.mrb[0].mxu0 %v172
      %v312 = vpop.f32.mrb[0].mxu0
      %v313 = vadd.f32 0.0, %v312
      %v314 = vpop.f32.mrb[0].mxu0
      %v315 = vpop.f32.mrb[0].mxu0
      %v316 = vadd.f32 0.0, %v315
      %v317 = vpop.f32.mrb[0].mxu0
      %318 = vmatprep.mubr.bf16.mxu0 0
      %319 = vmatmul.mubr.bf16.gmra.mrb[0].mxu0 %v173
      %v320 = vpop.f32.mrb[0].mxu0
      %v321 = vadd.f32 0.0, %v320
      %v322 = vpop.f32.mrb[0].mxu0
      %v323 = vpop.f32.mrb[0].mxu0
      %v324 = vadd.f32 0.0, %v323
      %v325 = vpop.f32.mrb[0].mxu0
      %326 = vdwg.mxu0
      %v327 = vadd.f32 %v102, %v265
      %v328 = vadd.f32 %v103, %v268
      %v329 = vadd.f32 %v104, %v273
      %v330 = vadd.f32 %v105, %v276
      %v331 = vadd.f32 %v106, %v281
      %v332 = vadd.f32 %v107, %v284
      %v333 = vadd.f32 %v108, %v289
      %v334 = vadd.f32 %v109, %v292
      %v335 = vadd.f32 %v110, %v297
      %v336 = vadd.f32 %v111, %v300
      %v337 = vadd.f32 %v112, %v305
      %v338 = vadd.f32 %v113, %v308
      %v339 = vadd.f32 %v114, %v313
      %v340 = vadd.f32 %v115, %v316
      %v341 = vadd.f32 %v116, %v321
      %v342 = vadd.f32 %v117, %v324
      %343 = vst [vmem:[#allocation2] sm:$0xff] %v327
      %344 = vst [vmem:[#allocation2 + $0x8] sm:$0xff] %v328
      %345 = vst [vmem:[#allocation2 + $0x10] sm:$0xff] %v329
      %346 = vst [vmem:[#allocation2 + $0x18] sm:$0xff] %v330
      %347 = vst [vmem:[#allocation2 + $0x20] sm:$0xff] %v331
      %348 = vst [vmem:[#allocation2 + $0x28] sm:$0xff] %v332
      %349 = vst [vmem:[#allocation2 + $0x30] sm:$0xff] %v333
      %350 = vst [vmem:[#allocation2 + $0x38] sm:$0xff] %v334
      %351 = vst [vmem:[#allocation2 + $0x40] sm:$0xff] %v335
      %352 = vst [vmem:[#allocation2 + $0x48] sm:$0xff] %v336
      %353 = vst [vmem:[#allocation2 + $0x50] sm:$0xff] %v337
      %354 = vst [vmem:[#allocation2 + $0x58] sm:$0xff] %v338
      %355 = vst [vmem:[#allocation2 + $0x60] sm:$0xff] %v339
      %356 = vst [vmem:[#allocation2 + $0x68] sm:$0xff] %v340
      %357 = vst [vmem:[#allocation2 + $0x70] sm:$0xff] %v341
      %358 = vst [vmem:[#allocation2 + $0x78] sm:$0xff] %v342
    $region29: #{tpu_custom_call.1} parent=1 // pred_fallthru
      _
    // Predicated region
    $region30: #{tpu_custom_call.1} parent=1 // pred_check
      %p359 = pneg %p54
    $region31: #{tpu_custom_call.1} parent=1 // pred_check_branch
      %361 = sbr.rel (%p359) target = $region33
    $region32: #{tpu_custom_call.1} parent=1 // pred_region
      %v362 = vld [vmem:[#allocation2] sm:$0xff]
      %v363 = vld [vmem:[#allocation2 + $0x8] sm:$0xff]
      %v364 = vld [vmem:[#allocation2 + $0x10] sm:$0xff]
      %v365 = vld [vmem:[#allocation2 + $0x18] sm:$0xff]
      %v366 = vld [vmem:[#allocation2 + $0x20] sm:$0xff]
      %v367 = vld [vmem:[#allocation2 + $0x28] sm:$0xff]
      %v368 = vld [vmem:[#allocation2 + $0x30] sm:$0xff]
      %v369 = vld [vmem:[#allocation2 + $0x38] sm:$0xff]
      %v370 = vld [vmem:[#allocation2 + $0x40] sm:$0xff]
      %v371 = vld [vmem:[#allocation2 + $0x48] sm:$0xff]
      %v372 = vld [vmem:[#allocation2 + $0x50] sm:$0xff]
      %v373 = vld [vmem:[#allocation2 + $0x58] sm:$0xff]
      %v374 = vld [vmem:[#allocation2 + $0x60] sm:$0xff]
      %v375 = vld [vmem:[#allocation2 + $0x68] sm:$0xff]
      %v376 = vld [vmem:[#allocation2 + $0x70] sm:$0xff]
      %v377 = vld [vmem:[#allocation2 + $0x78] sm:$0xff]
      %v378 = vld [vmem:[%s4] sm:$0x1]
      %v380 = vlaneseq
      %v381 = vshrl.u32 %v380, 7
      %v382 = vsub.s32 0, %v381
      %v383 = vrot.slane %v378, %v382
      %v385 = vadd.f32 %v362, %v383
      %v386 = vadd.f32 %v363, %v383
      %v387 = vadd.f32 %v364, %v383
      %v388 = vadd.f32 %v365, %v383
      %v389 = vadd.f32 %v366, %v383
      %v390 = vadd.f32 %v367, %v383
      %v391 = vadd.f32 %v368, %v383
      %v392 = vadd.f32 %v369, %v383
      %v393 = vadd.f32 %v370, %v383
      %v394 = vadd.f32 %v371, %v383
      %v395 = vadd.f32 %v372, %v383
      %v396 = vadd.f32 %v373, %v383
      %v397 = vadd.f32 %v374, %v383
      %v398 = vadd.f32 %v375, %v383
      %v399 = vadd.f32 %v376, %v383
      %v400 = vadd.f32 %v377, %v383
      %401 = vst [vmem:[#allocation11] sm:$0xff] %v385
      %402 = vst [vmem:[#allocation11 + $0x8] sm:$0xff] %v386
      %403 = vst [vmem:[#allocation11 + $0x10] sm:$0xff] %v387
      %404 = vst [vmem:[#allocation11 + $0x18] sm:$0xff] %v388
      %405 = vst [vmem:[#allocation11 + $0x20] sm:$0xff] %v389
      %406 = vst [vmem:[#allocation11 + $0x28] sm:$0xff] %v390
      %407 = vst [vmem:[#allocation11 + $0x30] sm:$0xff] %v391
      %408 = vst [vmem:[#allocation11 + $0x38] sm:$0xff] %v392
      %409 = vst [vmem:[#allocation11 + $0x40] sm:$0xff] %v393
      %410 = vst [vmem:[#allocation11 + $0x48] sm:$0xff] %v394
      %411 = vst [vmem:[#allocation11 + $0x50] sm:$0xff] %v395
      %412 = vst [vmem:[#allocation11 + $0x58] sm:$0xff] %v396
      %413 = vst [vmem:[#allocation11 + $0x60] sm:$0xff] %v397
      %414 = vst [vmem:[#allocation11 + $0x68] sm:$0xff] %v398
      %415 = vst [vmem:[#allocation11 + $0x70] sm:$0xff] %v399
      %416 = vst [vmem:[#allocation11 + $0x78] sm:$0xff] %v400
    $region33: #{tpu_custom_call.1} parent=1 // pred_fallthru
      _
    // Predicated region
    $region34: #{tpu_custom_call.1} parent=1 // pred_check
      _
    $region35: #{tpu_custom_call.1} parent=1 // pred_check_branch
      %418 = sbr.rel (0) target = $region37
    $region36: #{tpu_custom_call.1} parent=1 // pred_region
      %s420 = ssub.s32 2048, 2048
      %421 = vsyncadd [#allocation8], %s420
      %s422 = sshll.u32 [#allocation11], 4
      %s423 = int_to_ptr.vmem [resolvable:$true] %s422
      %428 = dma.vmem_to_hbm [thread:$0]  %s423, 2048, %s5, [#allocation8], 128, 128, 8
    $region37: #{tpu_custom_call.1} parent=1 // pred_fallthru
      _
    // Predicated region
    $region38: #{tpu_custom_call.1} parent=1 // pred_check
      _
    $region39: #{tpu_custom_call.1} parent=1 // pred_check_branch
      %430 = sbr.rel (0) target = $region41
    $region40: #{tpu_custom_call.1} parent=1 // pred_region
      %431 = dma.done [#allocation8], 2048
    $region41: #{tpu_custom_call.1} parent=1 // pred_fallthru
      _
    %432 = vsyncpa [#allocation7], 1
    %433 = vsyncpa [#allocation10], 1
    %434 = vsyncpa [#allocation8], 1

</llo_original>
